<compile_context>
chip_gen: v7x
topology: tpu7x:2x2x1
jax: 0.10.0
libtpu: 0.0.40
codegen_flags: <defaults>
</compile_context>

<pallas_src>
import jax
import jax.numpy as jnp
from jax.experimental import pallas as pl
from jax.experimental.pallas import tpu as pltpu


def attn_embedding_kernel(x_ref, wac_ref, wcvf_ref, whf_ref, bout_ref, out_ref):
    x = x_ref[...]                                  # (TB, L, F), native dtype
    L = x.shape[1]
    in_dt = x.dtype

    # opt_embedded = lags_vectors[:, -1, :]
    opt = x[:, L - 1, :]                            # (TB, F)

    # u[b, l] = sum_g opt[b, g] * Wac[g, l]         (single MXU matmul)
    u = jnp.dot(opt, wac_ref[...], preferred_element_type=jnp.float32)   # (TB, L) f32

    # scores[b, f] = sum_l x[b, l, f] * u[b, l]     (VPU mul + sublane reduce)
    scores = jnp.sum(x * u[:, :, None], axis=1)                          # (TB, F) f32

    # sigmoid(s) = 0.5 * tanh(0.5 * s) + 0.5        (one exact EUP op)
    attn = 0.5 * jnp.tanh(0.5 * scores) + 0.5                            # (TB, F) f32

    # m[b, l] = sum_f x[b, l, f] * attn[b, f]       (VPU mul + lane reduce)
    m = jnp.sum(x * attn[:, None, :], axis=2)                            # (TB, L) f32

    # out = m @ Wcvf + opt @ Whf + b_out            (two MXU matmuls + bias)
    # (for bf16 inputs the m cast re-rounds once; tolerated per review)
    out = (jnp.dot(m.astype(in_dt), wcvf_ref[...],
                   preferred_element_type=jnp.float32)
           + jnp.dot(opt, whf_ref[...], preferred_element_type=jnp.float32)
           + bout_ref[...])
    out_ref[...] = out.astype(out_ref.dtype)


def _full_spec(shape):
    n = len(shape)
    return pl.BlockSpec(shape, lambda i, _n=n: (0,) * _n)


def _round_up(x, m):
    return ((x + m - 1) // m) * m


def attn_embedding(lags_vectors, wc, wa, wv, bv, wh, bh, wf, *, block_b=None):
    """
    lags_vectors: (B, L, F)
    wc: (K, L)   Conv2d(1, K, (1, L), bias=False) weight flattened
    wa: (F, K)   attn_weight.weight (PyTorch (out, in) layout)
    wv: (F, K)   fc_v.weight ; bv: (F,)
    wh: (F, F)   fc_h.weight ; bh: (F,)
    wf: (F, 2F)  fc.weight (no bias)
    """
    B, L, F = lags_vectors.shape
    dt = lags_vectors.dtype

    # --- one-time weight folding outside the kernel (free in XLA) ---
    wfv_t = wf[:, :F].T                       # (F, F) acts on v
    wfh_t = wf[:, F:].T                       # (F, F) acts on h
    wac = wa @ wc                             # (F, L)
    wcvf = wc.T @ (wv.T @ wfv_t)              # (L, F)
    whf = wh.T @ wfh_t                        # (F, F)
    b_out = (bv @ wfv_t + bh @ wfh_t).reshape(1, F)

    # --- batch tiling: x is the only large operand ---
    if block_b is None:
        if B >= 2048:
            block_b = 1024                    # amortizes ~0.35 us/step overhead
        elif B >= 16:
            # at least 2 grid steps so the parallel axis shards over both
            # TensorCores on v7x (and megacore on v5e/v6e)
            block_b = _round_up(pl.cdiv(B, 2), 8)
        else:
            block_b = _round_up(B, 8)
    else:
        block_b = _round_up(block_b, 8)

    # pad B to a tile multiple instead of collapsing to a single block
    B_pad = _round_up(B, block_b)
    grid = (B_pad // block_b,)
    x_in = lags_vectors
    if B_pad != B:
        x_in = jnp.pad(lags_vectors, ((0, B_pad - B), (0, 0), (0, 0)))

    # --- VMEM budget from the lane-padded footprint (F pads to 128 lanes) ---
    itemsize = jnp.dtype(dt).itemsize
    lanes_f = _round_up(F, 128)
    subl_l = _round_up(L, 8)
    footprint = (2 * block_b * (subl_l * lanes_f + lanes_f) * itemsize   # x + out, dbl-buffered
                 + 4 * F * lanes_f * itemsize)                           # resident weights
    vmem_limit = int(min(64 * 1024 * 1024, max(32 * 1024 * 1024, 2 * footprint)))

    in_specs = [
        pl.BlockSpec((block_b, L, F), lambda i: (i, 0, 0)),   # x, tiled over batch
        _full_spec((F, L)),      # Wac
        _full_spec((L, F)),      # Wcvf
        _full_spec((F, F)),      # Whf
        _full_spec((1, F)),      # b_out
    ]
    out_specs = pl.BlockSpec((block_b, F), lambda i: (i, 0))

    out = pl.pallas_call(
        attn_embedding_kernel,
        out_shape=jax.ShapeDtypeStruct((B_pad, F), dt),
        grid=grid,
        in_specs=in_specs,
        out_specs=out_specs,
        compiler_params=pltpu.CompilerParams(
            dimension_semantics=("parallel",),
            vmem_limit_bytes=vmem_limit),
    )(x_in, wac, wcvf, whf, b_out)

    return out[:B] if B_pad != B else out


def attn_embedding_reference(x, wc, wa, wv, bv, wh, bh, wf):
    """Pure-JAX reference mirroring the PyTorch forward exactly (no reassociation)."""
    opt = x[:, -1, :]
    conv = jnp.einsum('blf,kl->bfk', x, wc)
    attn_logits = jnp.einsum('bfk,gk->bfg', conv, wa)
    attn = jax.nn.sigmoid(jnp.einsum('bfg,bg->bf', attn_logits, opt))
    F = x.shape[2]
    v = jnp.einsum('bfk,bf->bk', conv, attn) @ wv.T + bv
    h = opt @ wh.T + bh
    return jnp.concatenate([v, h], axis=1) @ wf.T


if __name__ == "__main__":
    # Shapes consistent with the module: factors=32, len(lag_set)=8, kernels=16, batch=2
    B, L, F, K = 2, 8, 32, 16

    key = jax.random.PRNGKey(0)
    kx, kc, ka, kv, kbv, kh, kbh, kf = jax.random.split(key, 8)

    x = jax.random.normal(kx, (B, L, F), dtype=jnp.float32)          # lags_vectors

    wc = jax.random.normal(kc, (K, L), dtype=jnp.float32) * 0.1      # conv (K,1,1,L) flattened
    wa = jax.random.normal(ka, (F, K), dtype=jnp.float32) * 0.1      # attn_weight.weight
    wv = jax.random.normal(kv, (F, K), dtype=jnp.float32) * 0.1      # fc_v.weight
    bv = jax.random.normal(kbv, (F,), dtype=jnp.float32) * 0.1       # fc_v.bias
    wh = jax.random.normal(kh, (F, F), dtype=jnp.float32) * 0.1      # fc_h.weight
    bh = jax.random.normal(kbh, (F,), dtype=jnp.float32) * 0.1       # fc_h.bias
    wf = jax.random.normal(kf, (F, 2 * F), dtype=jnp.float32) * 0.1  # fc.weight

    out = jax.block_until_ready(attn_embedding(x, wc, wa, wv, bv, wh, bh, wf))
    ref = attn_embedding_reference(x, wc, wa, wv, bv, wh, bh, wf)

    assert out.shape == (B, F)
    # Tolerance covers the reassociated / weight-folded FP summation order.
    assert jnp.allclose(out, ref, atol=1e-3, rtol=1e-3), "mismatch vs reference"

    print("KERNEL_OK")
</pallas_src>

<mosaic_0001>
module attributes {stable_mosaic.version = 11 : i64} {
  func.func @attn_embedding_kernel(%arg0: i32, %arg1: memref<8x8x32xf32, #tpu.memory_space<vmem>>, %arg2: memref<32x8xf32, #tpu.memory_space<vmem>>, %arg3: memref<8x32xf32, #tpu.memory_space<vmem>>, %arg4: memref<32x32xf32, #tpu.memory_space<vmem>>, %arg5: memref<1x32xf32, #tpu.memory_space<vmem>>, %arg6: memref<8x32xf32, #tpu.memory_space<vmem>>) attributes {dimension_semantics = [#tpu.dimension_semantics<parallel>], iteration_bounds = array<i64: 1>, scalar_prefetch = 0 : i64, scratch_operands = 0 : i64, tpu.core_type = #tpu.core_type<tc>, window_params = [{transform_indices = @transform_0, window_bounds = array<i64: 8, 8, 32>}, {pipeline_mode = #tpu.pipeline_mode<synchronous>, transform_indices = @transform_1, window_bounds = array<i64: 32, 8>}, {pipeline_mode = #tpu.pipeline_mode<synchronous>, transform_indices = @transform_2, window_bounds = array<i64: 8, 32>}, {pipeline_mode = #tpu.pipeline_mode<synchronous>, transform_indices = @transform_3, window_bounds = array<i64: 32, 32>}, {pipeline_mode = #tpu.pipeline_mode<synchronous>, transform_indices = @transform_4, window_bounds = array<i64: 1, 32>}, {transform_indices = @transform_5, window_bounds = array<i64: 8, 32>}]} {
    %c0 = arith.constant 0 : index
    %c0_0 = arith.constant 0 : index
    %c0_1 = arith.constant 0 : index
    %0 = vector.load %arg1[%c0, %c0_0, %c0_1] : memref<8x8x32xf32, #tpu.memory_space<vmem>>, vector<8x8x32xf32>
    %1 = vector.extract_strided_slice %0 {offsets = [0, 7, 0], sizes = [8, 1, 32], strides = [1, 1, 1]} : vector<8x8x32xf32> to vector<8x1x32xf32>
    %2 = vector.shape_cast %1 : vector<8x1x32xf32> to vector<8x32xf32>
    %c0_2 = arith.constant 0 : index
    %c0_3 = arith.constant 0 : index
    %3 = vector.load %arg2[%c0_2, %c0_3] : memref<32x8xf32, #tpu.memory_space<vmem>>, vector<32x8xf32>
    %cst = arith.constant dense<0.000000e+00> : vector<8x8xf32>
    %4 = tpu.matmul %2, %3, %cst {dimension_numbers = #tpu.dot_dimension_numbers<[1], [0], [0], [1], [0, 0, 1, 1], [], []>} : vector<8x32xf32>, vector<32x8xf32>, vector<8x8xf32> -> vector<8x8xf32>
    %5 = vector.shape_cast %4 : vector<8x8xf32> to vector<8x8x1xf32>
    %6 = vector.broadcast %5 : vector<8x8x1xf32> to vector<8x8x32xf32>
    %7 = arith.mulf %0, %6 : vector<8x8x32xf32>
    %cst_4 = arith.constant dense<0.000000e+00> : vector<8x32xf32>
    %8 = vector.multi_reduction <add>, %7, %cst_4 [1] : vector<8x8x32xf32> to vector<8x32xf32>
    %cst_5 = arith.constant 5.000000e-01 : f32
    %9 = vector.broadcast %cst_5 : f32 to vector<8x32xf32>
    %10 = arith.mulf %9, %8 : vector<8x32xf32>
    %11 = math.tanh %10 : vector<8x32xf32>
    %cst_6 = arith.constant 5.000000e-01 : f32
    %12 = vector.broadcast %cst_6 : f32 to vector<8x32xf32>
    %13 = arith.mulf %12, %11 : vector<8x32xf32>
    %cst_7 = arith.constant 5.000000e-01 : f32
    %14 = vector.broadcast %cst_7 : f32 to vector<8x32xf32>
    %15 = arith.addf %13, %14 : vector<8x32xf32>
    %16 = vector.shape_cast %15 : vector<8x32xf32> to vector<8x1x32xf32>
    %17 = vector.broadcast %16 : vector<8x1x32xf32> to vector<8x8x32xf32>
    %18 = arith.mulf %0, %17 : vector<8x8x32xf32>
    %cst_8 = arith.constant dense<0.000000e+00> : vector<8x8xf32>
    %19 = vector.multi_reduction <add>, %18, %cst_8 [2] : vector<8x8x32xf32> to vector<8x8xf32>
    %c0_9 = arith.constant 0 : index
    %c0_10 = arith.constant 0 : index
    %20 = vector.load %arg3[%c0_9, %c0_10] : memref<8x32xf32, #tpu.memory_space<vmem>>, vector<8x32xf32>
    %cst_11 = arith.constant dense<0.000000e+00> : vector<8x32xf32>
    %21 = tpu.matmul %19, %20, %cst_11 {dimension_numbers = #tpu.dot_dimension_numbers<[1], [0], [0], [1], [0, 0, 1, 1], [], []>} : vector<8x8xf32>, vector<8x32xf32>, vector<8x32xf32> -> vector<8x32xf32>
    %c0_12 = arith.constant 0 : index
    %c0_13 = arith.constant 0 : index
    %22 = vector.load %arg4[%c0_12, %c0_13] : memref<32x32xf32, #tpu.memory_space<vmem>>, vector<32x32xf32>
    %cst_14 = arith.constant dense<0.000000e+00> : vector<8x32xf32>
    %23 = tpu.matmul %2, %22, %cst_14 {dimension_numbers = #tpu.dot_dimension_numbers<[1], [0], [0], [1], [0, 0, 1, 1], [], []>} : vector<8x32xf32>, vector<32x32xf32>, vector<8x32xf32> -> vector<8x32xf32>
    %24 = arith.addf %21, %23 : vector<8x32xf32>
    %c0_15 = arith.constant 0 : index
    %c0_16 = arith.constant 0 : index
    %25 = vector.load %arg5[%c0_15, %c0_16] : memref<1x32xf32, #tpu.memory_space<vmem>>, vector<1x32xf32>
    %26 = vector.broadcast %25 : vector<1x32xf32> to vector<8x32xf32>
    %27 = arith.addf %24, %26 : vector<8x32xf32>
    %c0_17 = arith.constant 0 : index
    %c0_18 = arith.constant 0 : index
    %28 = vector.load %arg6[%c0_17, %c0_18] : memref<8x32xf32, #tpu.memory_space<vmem>>, vector<8x32xf32>
    tpu.vector_store %arg6[%c0_17, %c0_18], %27 {strides = array<i32>} : memref<8x32xf32, #tpu.memory_space<vmem>>, vector<8x32xf32>,
    return
  }
  func.func @transform_0(%arg0: i32) -> (i32, i32, i32) {
    %c0_i32 = arith.constant 0 : i32
    %c0_i32_0 = arith.constant 0 : i32
    %c0_i32_1 = arith.constant 0 : i32
    return %arg0, %c0_i32, %c0_i32_0 : i32, i32, i32
  }
  func.func @transform_1(%arg0: i32) -> (i32, i32) {
    %c0_i32 = arith.constant 0 : i32
    %c0_i32_0 = arith.constant 0 : i32
    %c0_i32_1 = arith.constant 0 : i32
    return %c0_i32, %c0_i32_0 : i32, i32
  }
  func.func @transform_2(%arg0: i32) -> (i32, i32) {
    %c0_i32 = arith.constant 0 : i32
    %c0_i32_0 = arith.constant 0 : i32
    %c0_i32_1 = arith.constant 0 : i32
    return %c0_i32, %c0_i32_0 : i32, i32
  }
  func.func @transform_3(%arg0: i32) -> (i32, i32) {
    %c0_i32 = arith.constant 0 : i32
    %c0_i32_0 = arith.constant 0 : i32
    %c0_i32_1 = arith.constant 0 : i32
    return %c0_i32, %c0_i32_0 : i32, i32
  }
  func.func @transform_4(%arg0: i32) -> (i32, i32) {
    %c0_i32 = arith.constant 0 : i32
    %c0_i32_0 = arith.constant 0 : i32
    %c0_i32_1 = arith.constant 0 : i32
    return %c0_i32, %c0_i32_0 : i32, i32
  }
  func.func @transform_5(%arg0: i32) -> (i32, i32) {
    %c0_i32 = arith.constant 0 : i32
    %c0_i32_0 = arith.constant 0 : i32
    return %arg0, %c0_i32 : i32, i32
  }
}

</mosaic_0001>

<llo_original>
// kernel: tpu_custom_call.1
$region0: #{tpu_custom_call.1}
  #allocation0 [shape = 'u32[]', space=smem, size = 0x4, offset = 0x4, fixed_abs, tag = 'smem constant byte address 0x4 - core index']
  #allocation1 [shape = 'u32[144,128]{1,0:T(1,128)}', space=vmem, size = 0x12000, scoped, tag = 'internal scratch']
  %s0 = inlined_call_operand.hbm [shape: f32[8,8,32], index: 0, kind: input, shape index: {}]
  %s1 = inlined_call_operand.vmem [shape: f32[32,8], index: 1, kind: input, shape index: {}]
  %s2 = inlined_call_operand.vmem [shape: f32[8,32], index: 2, kind: input, shape index: {}]
  %s3 = inlined_call_operand.vmem [shape: f32[32,32], index: 3, kind: input, shape index: {}]
  %s4 = inlined_call_operand.vmem [shape: f32[1,32], index: 4, kind: input, shape index: {}]
  %s5 = inlined_call_operand.hbm [shape: f32[8,32], index: 5, kind: output, shape index: {}]
  %s6 = sld [smem:[#allocation0]]
  $region34: #{tpu_custom_call.1} parent=0
    _
  %s8 = ssub.s32 1, %s6
  %s9 = scalar_select 0, %s8, %s6
  $region1: #{tpu_custom_call.1} parent=0
    #allocation2 [shape = 'u8[32768]{0}', space=vmem, size = 0x8000, scoped, tag = 'input window, operand 0, single buffered']
    #allocation3 [shape = 's32[1]{0}', space=sflag, size = 0x4, scoped, tag = 'scoped memory for tpu_custom_call.1']
    #allocation4 [shape = 's32[1]{0}', space=sflag, size = 0x4, scoped, tag = 'scoped memory for tpu_custom_call.1']
    #allocation5 [shape = 'u8[4096]{0}', space=vmem, size = 0x1000, scoped, tag = 'output window, operand 0, single buffered']
    %10 = vsyncpa [#allocation3], 0
    %11 = vsyncpa [#allocation4], 0
    // Predicated region
    $region2: #{tpu_custom_call.1} parent=1 // pred_check
      _
    $region3: #{tpu_custom_call.1} parent=1 // pred_check_branch
      %13 = sbr.rel (0) target = $region5
    $region4: #{tpu_custom_call.1} parent=1 // pred_region
      %s15 = ssub.s32 1024, 1024
      %16 = vsyncadd [#allocation3], %s15
      %s17 = sshll.u32 [#allocation2], 4
      %s18 = int_to_ptr.vmem [resolvable:$true] %s17
      %23 = dma.hbm_to_vmem [thread:$0]  %s0, 1024, %s18, [#allocation3], 128, 128, 8
    $region5: #{tpu_custom_call.1} parent=1 // pred_fallthru
      _
    // Predicated region
    $region6: #{tpu_custom_call.1} parent=1 // pred_check
      _
    $region7: #{tpu_custom_call.1} parent=1 // pred_check_branch
      %25 = sbr.rel (0) target = $region9
    $region8: #{tpu_custom_call.1} parent=1 // pred_region
      _
    $region9: #{tpu_custom_call.1} parent=1 // pred_fallthru
      _
    // Predicated region
    $region10: #{tpu_custom_call.1} parent=1 // pred_check
      _
    $region11: #{tpu_custom_call.1} parent=1 // pred_check_branch
      %27 = sbr.rel (0) target = $region13
    $region12: #{tpu_custom_call.1} parent=1 // pred_region
      _
    $region13: #{tpu_custom_call.1} parent=1 // pred_fallthru
      _
    // Predicated region
    $region14: #{tpu_custom_call.1} parent=1 // pred_check
      _
    $region15: #{tpu_custom_call.1} parent=1 // pred_check_branch
      %29 = sbr.rel (0) target = $region17
    $region16: #{tpu_custom_call.1} parent=1 // pred_region
      _
    $region17: #{tpu_custom_call.1} parent=1 // pred_fallthru
      _
    // Predicated region
    $region18: #{tpu_custom_call.1} parent=1 // pred_check
      _
    $region19: #{tpu_custom_call.1} parent=1 // pred_check_branch
      %31 = sbr.rel (0) target = $region21
    $region20: #{tpu_custom_call.1} parent=1 // pred_region
      _
    $region21: #{tpu_custom_call.1} parent=1 // pred_fallthru
      _
    // Predicated region
    $region22: #{tpu_custom_call.1} parent=1 // pred_check
      _
    $region23: #{tpu_custom_call.1} parent=1 // pred_check_branch
      %33 = sbr.rel (0) target = $region25
    $region24: #{tpu_custom_call.1} parent=1 // pred_region
      %34 = dma.done [#allocation3], 1024
    $region25: #{tpu_custom_call.1} parent=1 // pred_fallthru
      _
    %v35 = vld [vmem:[#allocation2] sm:$0xff]
    %v36 = vld [vmem:[#allocation2 + $0x8] sm:$0xff]
    %v37 = vld [vmem:[#allocation2 + $0x10] sm:$0xff]
    %v38 = vld [vmem:[#allocation2 + $0x18] sm:$0xff]
    %v39 = vld [vmem:[#allocation2 + $0x20] sm:$0xff]
    %v40 = vld [vmem:[#allocation2 + $0x28] sm:$0xff]
    %v41 = vld [vmem:[#allocation2 + $0x30] sm:$0xff]
    %v42 = vld [vmem:[#allocation2 + $0x38] sm:$0xff]
    %v43 = vld [vmem:[%s1] sm:$0xff]
    %v44 = vld [vmem:[%s1 + $0x8] sm:$0xff]
    %v45 = vld [vmem:[%s1 + $0x10] sm:$0xff]
    %v46 = vld [vmem:[%s1 + $0x18] sm:$0xff]
    %v55 = vrot.slane %v35, 7
    %v56 = vrot.slane %v36, 6
    %vm57 = vcmask 1041409
    %v58 = vsel %vm57, %v56, %v55
    %v59 = vrot.slane %v37, 5
    %vm60 = vcmask 1042434
    %v61 = vsel %vm60, %v59, %v58
    %v62 = vrot.slane %v38, 4
    %vm63 = vcmask 1043459
    %v64 = vsel %vm63, %v62, %v61
    %v65 = vrot.slane %v39, 3
    %vm66 = vcmask 1044484
    %v67 = vsel %vm66, %v65, %v64
    %v68 = vrot.slane %v40, 2
    %vm69 = vcmask 1045509
    %v70 = vsel %vm69, %v68, %v67
    %v71 = vrot.slane %v41, 1
    %vm72 = vcmask 1046534
    %v73 = vsel %vm72, %v71, %v70
    %vm74 = vcmask 1047559
    %v75 = vsel %vm74, %v42, %v73
    %vm76 = vcmask 261120
    %v77 = vsel %vm76, %v75, 0
    %79 = vmatprep.subr.mxu0 0.0
    %80 = vmatpush1.msra.mxu0 %v43
    %81 = vmatprep.subr.mxu0 0.0
    %82 = vmatpush1.msra.mxu0 %v44
    %83 = vmatprep.subr.mxu0 0.0
    %84 = vmatpush1.msra.mxu0 %v45
    %85 = vmatprep.subr.mxu0 0.0
    %86 = vmatpush1.msra.mxu0 %v46
    %87 = vmatprep.subr.mxu0 0.0
    %88 = vmatpush1.msra.mxu0 0.0
    %89 = vmatprep.subr.mxu0 0.0
    %90 = vmatpush1.msra.mxu0 0.0
    %91 = vmatprep.subr.mxu0 0.0
    %92 = vmatpush1.msra.mxu0 0.0
    %93 = vmatprep.subr.mxu0 0.0
    %94 = vmatpush1.msra.mxu0 0.0
    %95 = vmatprep.subr.mxu0 0.0
    %96 = vmatpush1.msra.mxu0 0.0
    %97 = vmatprep.subr.mxu0 0.0
    %98 = vmatpush1.msra.mxu0 0.0
    %99 = vmatprep.subr.mxu0 0.0
    %100 = vmatpush1.msra.mxu0 0.0
    %101 = vmatprep.subr.mxu0 0.0
    %102 = vmatpush1.msra.mxu0 0.0
    %103 = vmatprep.subr.mxu0 0.0
    %104 = vmatpush1.msra.mxu0 0.0
    %105 = vmatprep.subr.mxu0 0.0
    %106 = vmatpush1.msra.mxu0 0.0
    %107 = vmatprep.subr.mxu0 0.0
    %108 = vmatpush1.msra.mxu0 0.0
    %109 = vmatprep.subr.mxu0 0.0
    %110 = vmatpush1.msra.mxu0 0.0
    %111 = vmatprep.subr.mxu0 0.0
    %112 = vmatpush1.msra.mxu0 0.0
    %113 = vmatprep.subr.mxu0 0.0
    %114 = vmatpush1.msra.mxu0 0.0
    %115 = vmatprep.subr.mxu0 0.0
    %116 = vmatpush1.msra.mxu0 0.0
    %117 = vmatprep.subr.mxu0 0.0
    %118 = vmatpush1.msra.mxu0 0.0
    %119 = vmatprep.subr.mxu0 0.0
    %120 = vmatpush1.msra.mxu0 0.0
    %121 = vmatprep.subr.mxu0 0.0
    %122 = vmatpush1.msra.mxu0 0.0
    %123 = vmatprep.subr.mxu0 0.0
    %124 = vmatpush1.msra.mxu0 0.0
    %125 = vmatprep.subr.mxu0 0.0
    %126 = vmatpush1.msra.mxu0 0.0
    %127 = vmatprep.subr.mxu0 0.0
    %128 = vmatpush1.msra.mxu0 0.0
    %129 = vmatprep.subr.mxu0 0.0
    %130 = vmatpush1.msra.mxu0 0.0
    %131 = vmatprep.subr.mxu0 0.0
    %132 = vmatpush1.msra.mxu0 0.0
    %133 = vmatprep.subr.mxu0 0.0
    %134 = vmatpush1.msra.mxu0 0.0
    %135 = vmatprep.subr.mxu0 0.0
    %136 = vmatpush1.msra.mxu0 0.0
    %137 = vmatprep.subr.mxu0 0.0
    %138 = vmatpush1.msra.mxu0 0.0
    %139 = vmatprep.subr.mxu0 0.0
    %140 = vmatpush1.msra.mxu0 0.0
    %141 = vmatprep.subr.mxu0 0.0
    %142 = vmatpush1.msra.mxu0 0.0
    %143 = vmatprep.mubr.f32.mxu0 0.0
    %144 = vmatmul.mubr.f32.gmra.mrb[0].mxu0 %v77
    %v145 = vpop.f32.mrb[0].mxu0
    %v146 = vadd.f32 0.0, %v145
    %v147 = vpop.f32.mrb[0].mxu0
    %148 = vdwg.mxu0
    %v149 = vlaneseq
    %v150 = vshrl.u32 %v149, 7
    %v151 = vsub.s32 0, %v150
    %v152 = vrot.slane %v146, %v151
    %154 = vbcast.lane.b32.xlu0 %v152, 256
    %v155 = vpop.permute.xlu0 %154
    %v156 = vlaneseq
    %v157 = vshrl.u32 %v156, 7
    %v158 = vsub.s32 1, %v157
    %v159 = vrot.slane %v146, %v158
    %161 = vbcast.lane.b32.xlu0 %v159, 256
    %v162 = vpop.permute.xlu0 %161
    %v163 = vlaneseq
    %v164 = vshrl.u32 %v163, 7
    %v165 = vsub.s32 2, %v164
    %v166 = vrot.slane %v146, %v165
    %168 = vbcast.lane.b32.xlu0 %v166, 256
    %v169 = vpop.permute.xlu0 %168
    %v170 = vlaneseq
    %v171 = vshrl.u32 %v170, 7
    %v172 = vsub.s32 3, %v171
    %v173 = vrot.slane %v146, %v172
    %175 = vbcast.lane.b32.xlu0 %v173, 256
    %v176 = vpop.permute.xlu0 %175
    %v177 = vlaneseq
    %v178 = vshrl.u32 %v177, 7
    %v179 = vsub.s32 4, %v178
    %v180 = vrot.slane %v146, %v179
    %182 = vbcast.lane.b32.xlu0 %v180, 256
    %v183 = vpop.permute.xlu0 %182
    %v184 = vlaneseq
    %v185 = vshrl.u32 %v184, 7
    %v186 = vsub.s32 5, %v185
    %v187 = vrot.slane %v146, %v186
    %189 = vbcast.lane.b32.xlu0 %v187, 256
    %v190 = vpop.permute.xlu0 %189
    %v191 = vlaneseq
    %v192 = vshrl.u32 %v191, 7
    %v193 = vsub.s32 6, %v192
    %v194 = vrot.slane %v146, %v193
    %196 = vbcast.lane.b32.xlu0 %v194, 256
    %v197 = vpop.permute.xlu0 %196
    %v198 = vlaneseq
    %v199 = vshrl.u32 %v198, 7
    %v200 = vsub.s32 7, %v199
    %v201 = vrot.slane %v146, %v200
    %203 = vbcast.lane.b32.xlu0 %v201, 256
    %v204 = vpop.permute.xlu0 %203
    %v205 = vmul.f32 %v35, %v155
    %v206 = vmul.f32 %v36, %v162
    %v207 = vmul.f32 %v37, %v169
    %v208 = vmul.f32 %v38, %v176
    %v209 = vmul.f32 %v39, %v183
    %v210 = vmul.f32 %v40, %v190
    %v211 = vmul.f32 %v41, %v197
    %v212 = vmul.f32 %v42, %v204
    %v213 = vsel %vm76, %v205, 0.0
    %v214 = vrot.slane %v213, 4
    %v215 = vadd.f32 %v213, %v214
    %v216 = vrot.slane %v215, 2
    %v217 = vadd.f32 %v215, %v216
    %v218 = vrot.slane %v217, 1
    %v219 = vadd.f32 %v217, %v218
    %v220 = vsel %vm76, %v206, 0.0
    %v221 = vrot.slane %v220, 4
    %v222 = vadd.f32 %v220, %v221
    %v223 = vrot.slane %v222, 2
    %v224 = vadd.f32 %v222, %v223
    %v225 = vrot.slane %v224, 1
    %v226 = vadd.f32 %v224, %v225
    %v227 = vsel %vm76, %v207, 0.0
    %v228 = vrot.slane %v227, 4
    %v229 = vadd.f32 %v227, %v228
    %v230 = vrot.slane %v229, 2
    %v231 = vadd.f32 %v229, %v230
    %v232 = vrot.slane %v231, 1
    %v233 = vadd.f32 %v231, %v232
    %v234 = vsel %vm76, %v208, 0.0
    %v235 = vrot.slane %v234, 4
    %v236 = vadd.f32 %v234, %v235
    %v237 = vrot.slane %v236, 2
    %v238 = vadd.f32 %v236, %v237
    %v239 = vrot.slane %v238, 1
    %v240 = vadd.f32 %v238, %v239
    %v241 = vsel %vm76, %v209, 0.0
    %v242 = vrot.slane %v241, 4
    %v243 = vadd.f32 %v241, %v242
    %v244 = vrot.slane %v243, 2
    %v245 = vadd.f32 %v243, %v244
    %v246 = vrot.slane %v245, 1
    %v247 = vadd.f32 %v245, %v246
    %v248 = vsel %vm76, %v210, 0.0
    %v249 = vrot.slane %v248, 4
    %v250 = vadd.f32 %v248, %v249
    %v251 = vrot.slane %v250, 2
    %v252 = vadd.f32 %v250, %v251
    %v253 = vrot.slane %v252, 1
    %v254 = vadd.f32 %v252, %v253
    %v255 = vsel %vm76, %v211, 0.0
    %v256 = vrot.slane %v255, 4
    %v257 = vadd.f32 %v255, %v256
    %v258 = vrot.slane %v257, 2
    %v259 = vadd.f32 %v257, %v258
    %v260 = vrot.slane %v259, 1
    %v261 = vadd.f32 %v259, %v260
    %v262 = vsel %vm76, %v212, 0.0
    %v263 = vrot.slane %v262, 4
    %v264 = vadd.f32 %v262, %v263
    %v265 = vrot.slane %v264, 2
    %v266 = vadd.f32 %v264, %v265
    %v267 = vrot.slane %v266, 1
    %v268 = vadd.f32 %v266, %v267
    %v269 = vmul.f32 %v219, 0.5
    %v270 = vmul.f32 %v226, 0.5
    %v271 = vmul.f32 %v233, 0.5
    %v272 = vmul.f32 %v240, 0.5
    %v273 = vmul.f32 %v247, 0.5
    %v274 = vmul.f32 %v254, 0.5
    %v275 = vmul.f32 %v261, 0.5
    %v276 = vmul.f32 %v268, 0.5
    %v277 = vtanh.pop %v269
    %v278 = vtanh.pop %v270
    %v279 = vtanh.pop %v271
    %v280 = vtanh.pop %v272
    %v281 = vtanh.pop %v273
    %v282 = vtanh.pop %v274
    %v283 = vtanh.pop %v275
    %v284 = vtanh.pop %v276
    %v285 = vmul.f32 %v277, 0.5
    %v286 = vmul.f32 %v278, 0.5
    %v287 = vmul.f32 %v279, 0.5
    %v288 = vmul.f32 %v280, 0.5
    %v289 = vmul.f32 %v281, 0.5
    %v290 = vmul.f32 %v282, 0.5
    %v291 = vmul.f32 %v283, 0.5
    %v292 = vmul.f32 %v284, 0.5
    %v293 = vadd.f32 %v285, 0.5
    %v294 = vadd.f32 %v286, 0.5
    %v295 = vadd.f32 %v287, 0.5
    %v296 = vadd.f32 %v288, 0.5
    %v297 = vadd.f32 %v289, 0.5
    %v298 = vadd.f32 %v290, 0.5
    %v299 = vadd.f32 %v291, 0.5
    %v300 = vadd.f32 %v292, 0.5
    %v301 = vmul.f32 %v35, %v293
    %v302 = vmul.f32 %v36, %v294
    %v303 = vmul.f32 %v37, %v295
    %v304 = vmul.f32 %v38, %v296
    %v305 = vmul.f32 %v39, %v297
    %v306 = vmul.f32 %v40, %v298
    %v307 = vmul.f32 %v41, %v299
    %v308 = vmul.f32 %v42, %v300
    %v309 = vsel %vm76, %v301, 0.0
    %310 = vadd.xlane.f32.xlu0 %v309
    %v311 = vpop.xlane.xlu0 %310
    %v312 = vsel %vm76, %v302, 0.0
    %313 = vadd.xlane.f32.xlu0 %v312
    %v314 = vpop.xlane.xlu0 %313
    %v315 = vsel %vm76, %v303, 0.0
    %316 = vadd.xlane.f32.xlu0 %v315
    %v317 = vpop.xlane.xlu0 %316
    %v318 = vsel %vm76, %v304, 0.0
    %319 = vadd.xlane.f32.xlu0 %v318
    %v320 = vpop.xlane.xlu0 %319
    %v321 = vsel %vm76, %v305, 0.0
    %322 = vadd.xlane.f32.xlu0 %v321
    %v323 = vpop.xlane.xlu0 %322
    %v324 = vsel %vm76, %v306, 0.0
    %325 = vadd.xlane.f32.xlu0 %v324
    %v326 = vpop.xlane.xlu0 %325
    %v327 = vsel %vm76, %v307, 0.0
    %328 = vadd.xlane.f32.xlu0 %v327
    %v329 = vpop.xlane.xlu0 %328
    %v330 = vsel %vm76, %v308, 0.0
    %331 = vadd.xlane.f32.xlu0 %v330
    %v332 = vpop.xlane.xlu0 %331
    %v333 = vld [vmem:[%s2] sm:$0xff]
    %v334 = vld [vmem:[%s3] sm:$0xff]
    %v335 = vld [vmem:[%s3 + $0x8] sm:$0xff]
    %v336 = vld [vmem:[%s3 + $0x10] sm:$0xff]
    %v337 = vld [vmem:[%s3 + $0x18] sm:$0xff]
    %338 = vmatprep.subr.mxu0 0.0
    %339 = vmatpush1.msra.mxu0 %v334
    %340 = vmatprep.subr.mxu0 0.0
    %341 = vmatpush1.msra.mxu0 %v335
    %342 = vmatprep.subr.mxu0 0.0
    %343 = vmatpush1.msra.mxu0 %v336
    %344 = vmatprep.subr.mxu0 0.0
    %345 = vmatpush1.msra.mxu0 %v337
    %346 = vmatprep.subr.mxu0 0.0
    %347 = vmatpush1.msra.mxu0 0.0
    %348 = vmatprep.subr.mxu0 0.0
    %349 = vmatpush1.msra.mxu0 0.0
    %350 = vmatprep.subr.mxu0 0.0
    %351 = vmatpush1.msra.mxu0 0.0
    %352 = vmatprep.subr.mxu0 0.0
    %353 = vmatpush1.msra.mxu0 0.0
    %354 = vmatprep.subr.mxu0 0.0
    %355 = vmatpush1.msra.mxu0 0.0
    %356 = vmatprep.subr.mxu0 0.0
    %357 = vmatpush1.msra.mxu0 0.0
    %358 = vmatprep.subr.mxu0 0.0
    %359 = vmatpush1.msra.mxu0 0.0
    %360 = vmatprep.subr.mxu0 0.0
    %361 = vmatpush1.msra.mxu0 0.0
    %362 = vmatprep.subr.mxu0 0.0
    %363 = vmatpush1.msra.mxu0 0.0
    %364 = vmatprep.subr.mxu0 0.0
    %365 = vmatpush1.msra.mxu0 0.0
    %366 = vmatprep.subr.mxu0 0.0
    %367 = vmatpush1.msra.mxu0 0.0
    %368 = vmatprep.subr.mxu0 0.0
    %369 = vmatpush1.msra.mxu0 0.0
    %370 = vmatprep.subr.mxu0 0.0
    %371 = vmatpush1.msra.mxu0 0.0
    %372 = vmatprep.subr.mxu0 0.0
    %373 = vmatpush1.msra.mxu0 0.0
    %374 = vmatprep.subr.mxu0 0.0
    %375 = vmatpush1.msra.mxu0 0.0
    %376 = vmatprep.subr.mxu0 0.0
    %377 = vmatpush1.msra.mxu0 0.0
    %378 = vmatprep.subr.mxu0 0.0
    %379 = vmatpush1.msra.mxu0 0.0
    %380 = vmatprep.subr.mxu0 0.0
    %381 = vmatpush1.msra.mxu0 0.0
    %382 = vmatprep.subr.mxu0 0.0
    %383 = vmatpush1.msra.mxu0 0.0
    %384 = vmatprep.subr.mxu0 0.0
    %385 = vmatpush1.msra.mxu0 0.0
    %386 = vmatprep.subr.mxu0 0.0
    %387 = vmatpush1.msra.mxu0 0.0
    %388 = vmatprep.subr.mxu0 0.0
    %389 = vmatpush1.msra.mxu0 0.0
    %390 = vmatprep.subr.mxu0 0.0
    %391 = vmatpush1.msra.mxu0 0.0
    %392 = vmatprep.subr.mxu0 0.0
    %393 = vmatpush1.msra.mxu0 0.0
    %394 = vmatprep.subr.mxu0 0.0
    %395 = vmatpush1.msra.mxu0 0.0
    %396 = vmatprep.subr.mxu0 0.0
    %397 = vmatpush1.msra.mxu0 0.0
    %398 = vmatprep.subr.mxu0 0.0
    %399 = vmatpush1.msra.mxu0 0.0
    %400 = vmatprep.subr.mxu0 0.0
    %401 = vmatpush1.msra.mxu0 0.0
    %402 = vmatprep.mubr.f32.mxu0 0.0
    %403 = vmatmul.mubr.f32.gmra.mrb[0].mxu0 %v77
    %v404 = vpop.f32.mrb[0].mxu0
    %v405 = vadd.f32 0.0, %v404
    %v406 = vpop.f32.mrb[0].mxu0
    %407 = vdwg.mxu0
    %v416 = vlaneseq
    %v417 = vand.u32 %v416, 127
    %v418 = vlaneseq
    %v419 = vshrl.u32 %v418, 7
    %v420 = vsub.s32 %v417, %v419
    %v421 = vrot.slane %v311, %v420
    %v422 = vlaneseq
    %v423 = vshrl.u32 %v422, 7
    %v424 = vsub.s32 %v417, %v423
    %v425 = vrot.slane %v314, %v424
    %v426 = vlaneseq
    %v427 = vshrl.u32 %v426, 7
    %v428 = vsub.s32 %v417, %v427
    %v429 = vrot.slane %v317, %v428
    %v430 = vlaneseq
    %v431 = vshrl.u32 %v430, 7
    %v432 = vsub.s32 %v417, %v431
    %v433 = vrot.slane %v320, %v432
    %v434 = vlaneseq
    %v435 = vshrl.u32 %v434, 7
    %v436 = vsub.s32 %v417, %v435
    %v437 = vrot.slane %v323, %v436
    %v438 = vlaneseq
    %v439 = vshrl.u32 %v438, 7
    %v440 = vsub.s32 %v417, %v439
    %v441 = vrot.slane %v326, %v440
    %v442 = vlaneseq
    %v443 = vshrl.u32 %v442, 7
    %v444 = vsub.s32 %v417, %v443
    %v445 = vrot.slane %v329, %v444
    %v446 = vlaneseq
    %v447 = vshrl.u32 %v446, 7
    %v448 = vsub.s32 %v417, %v447
    %v449 = vrot.slane %v332, %v448
    %v450 = vsel %vm57, %v425, %v421
    %v451 = vsel %vm60, %v429, %v450
    %v452 = vsel %vm63, %v433, %v451
    %v453 = vsel %vm66, %v437, %v452
    %v454 = vsel %vm69, %v441, %v453
    %v455 = vsel %vm72, %v445, %v454
    %v456 = vsel %vm74, %v449, %v455
    %vm457 = vcmask 64512
    %v458 = vsel %vm457, %v456, 0
    %460 = vmatprep.subr.mxu0 0.0
    %461 = vmatpush1.msra.mxu0 %v333
    %462 = vmatprep.subr.mxu0 0.0
    %463 = vmatpush1.msra.mxu0 0.0
    %464 = vmatprep.subr.mxu0 0.0
    %465 = vmatpush1.msra.mxu0 0.0
    %466 = vmatprep.subr.mxu0 0.0
    %467 = vmatpush1.msra.mxu0 0.0
    %468 = vmatprep.subr.mxu0 0.0
    %469 = vmatpush1.msra.mxu0 0.0
    %470 = vmatprep.subr.mxu0 0.0
    %471 = vmatpush1.msra.mxu0 0.0
    %472 = vmatprep.subr.mxu0 0.0
    %473 = vmatpush1.msra.mxu0 0.0
    %474 = vmatprep.subr.mxu0 0.0
    %475 = vmatpush1.msra.mxu0 0.0
    %476 = vmatprep.subr.mxu0 0.0
    %477 = vmatpush1.msra.mxu0 0.0
    %478 = vmatprep.subr.mxu0 0.0
    %479 = vmatpush1.msra.mxu0 0.0
    %480 = vmatprep.subr.mxu0 0.0
    %481 = vmatpush1.msra.mxu0 0.0
    %482 = vmatprep.subr.mxu0 0.0
    %483 = vmatpush1.msra.mxu0 0.0
    %484 = vmatprep.subr.mxu0 0.0
    %485 = vmatpush1.msra.mxu0 0.0
    %486 = vmatprep.subr.mxu0 0.0
    %487 = vmatpush1.msra.mxu0 0.0
    %488 = vmatprep.subr.mxu0 0.0
    %489 = vmatpush1.msra.mxu0 0.0
    %490 = vmatprep.subr.mxu0 0.0
    %491 = vmatpush1.msra.mxu0 0.0
    %492 = vmatprep.subr.mxu0 0.0
    %493 = vmatpush1.msra.mxu0 0.0
    %494 = vmatprep.subr.mxu0 0.0
    %495 = vmatpush1.msra.mxu0 0.0
    %496 = vmatprep.subr.mxu0 0.0
    %497 = vmatpush1.msra.mxu0 0.0
    %498 = vmatprep.subr.mxu0 0.0
    %499 = vmatpush1.msra.mxu0 0.0
    %500 = vmatprep.subr.mxu0 0.0
    %501 = vmatpush1.msra.mxu0 0.0
    %502 = vmatprep.subr.mxu0 0.0
    %503 = vmatpush1.msra.mxu0 0.0
    %504 = vmatprep.subr.mxu0 0.0
    %505 = vmatpush1.msra.mxu0 0.0
    %506 = vmatprep.subr.mxu0 0.0
    %507 = vmatpush1.msra.mxu0 0.0
    %508 = vmatprep.subr.mxu0 0.0
    %509 = vmatpush1.msra.mxu0 0.0
    %510 = vmatprep.subr.mxu0 0.0
    %511 = vmatpush1.msra.mxu0 0.0
    %512 = vmatprep.subr.mxu0 0.0
    %513 = vmatpush1.msra.mxu0 0.0
    %514 = vmatprep.subr.mxu0 0.0
    %515 = vmatpush1.msra.mxu0 0.0
    %516 = vmatprep.subr.mxu0 0.0
    %517 = vmatpush1.msra.mxu0 0.0
    %518 = vmatprep.subr.mxu0 0.0
    %519 = vmatpush1.msra.mxu0 0.0
    %520 = vmatprep.subr.mxu0 0.0
    %521 = vmatpush1.msra.mxu0 0.0
    %522 = vmatprep.subr.mxu0 0.0
    %523 = vmatpush1.msra.mxu0 0.0
    %524 = vmatprep.mubr.f32.mxu0 0.0
    %525 = vmatmul.mubr.f32.gmra.mrb[0].mxu0 %v458
    %v526 = vpop.f32.mrb[0].mxu0
    %v527 = vadd.f32 %v405, %v526
    %v528 = vpop.f32.mrb[0].mxu0
    %529 = vdwg.mxu0
    %v530 = vld [vmem:[%s4] sm:$0x1]
    %v532 = vlaneseq
    %v533 = vshrl.u32 %v532, 7
    %v534 = vsub.s32 0, %v533
    %v535 = vrot.slane %v530, %v534
    %v537 = vadd.f32 %v527, %v535
    %538 = vst.msk [vmem:[#allocation5] sm:$0xff] %vm76, %v537
    // Predicated region
    $region26: #{tpu_custom_call.1} parent=1 // pred_check
      _
    $region27: #{tpu_custom_call.1} parent=1 // pred_check_branch
      %540 = sbr.rel (0) target = $region29
    $region28: #{tpu_custom_call.1} parent=1 // pred_region
      %s542 = ssub.s32 128, 128
      %543 = vsyncadd [#allocation4], %s542
      %s545 = sshll.u32 [#allocation5], 4
      %s546 = int_to_ptr.vmem [resolvable:$true] %s545
      %548 = dma.vmem_to_hbm [thread:$0]  %s546, 128, %s5, [#allocation4]
    $region29: #{tpu_custom_call.1} parent=1 // pred_fallthru
      _
    // Predicated region
    $region30: #{tpu_custom_call.1} parent=1 // pred_check
      _
    $region31: #{tpu_custom_call.1} parent=1 // pred_check_branch
      %550 = sbr.rel (0) target = $region33
    $region32: #{tpu_custom_call.1} parent=1 // pred_region
      %551 = dma.done [#allocation4], 128
    $region33: #{tpu_custom_call.1} parent=1 // pred_fallthru
      _
    %552 = vsyncpa [#allocation3], 1
    %553 = vsyncpa [#allocation4], 1

</llo_original>
